<compile_context>
chip_gen: v6e
topology: v6e:2x2x1
jax: 0.10.0
libtpu: 0.0.40
codegen_flags: <defaults>
</compile_context>

<pallas_src>
import functools
import math

import jax
import jax.numpy as jnp
from jax.experimental import pallas as pl
from jax.experimental.pallas import tpu as pltpu


def _conv_res_kernel(xpf_ref, resf_ref, w_ref, b_ref, o_ref,
                     *, H, Wp, KH, KW, Cp, dil):
    """relu(x + conv(x)) for one batch element, fully resident in VMEM.

    xpf_ref  : (1, Cp, Lf)        zero-padded input; channels padded to Cp
                                  (multiple of 8), spatial flattened with row
                                  stride Wp, plus a small tail pad.
    resf_ref : (1, Cin, H*Wp)     residual x on the same flattened (H, Wp) grid.
    w_ref    : (Cout, KH*KW*Cp)   fused (and causally masked) conv weight.
    b_ref    : (Cout, 1)          bias.
    o_ref    : (1, Cout, H*Wp)    output (lane-dense last dim).
    """
    HWp = H * Wp
    xb = xpf_ref[0, :, :]                                    # (Cp, Lf)

    # im2col in-register: tap (kh, kw) of the dilated kernel is a constant lane
    # shift of dil*(kh*Wp + kw) in the flattened padded image.
    taps = []
    for kh in range(KH):
        for kw in range(KW):
            s = dil * (kh * Wp + kw)
            taps.append(xb[:, s:s + HWp])                    # (Cp, HWp)
    patches = jnp.concatenate(taps, axis=0)                  # (KH*KW*Cp, HWp), 8-row aligned

    # One MXU matmul: (Cout, K) @ (K, HWp) -> (Cout, HWp), f32 accumulation.
    conv = jnp.dot(w_ref[...], patches, preferred_element_type=jnp.float32)
    y = conv + b_ref[...] + resf_ref[0, :, :]                # bias + residual
    o_ref[0, :, :] = jnp.maximum(y, 0.0)                     # relu, full-lane store


def _causal_mask(weight):
    """MaskedConv2d mask: zero kernel rows strictly below the centre row."""
    kh = weight.shape[2]
    keep = (jnp.arange(kh) <= kh // 2).astype(weight.dtype)
    return weight * keep[None, None, :, None]


@functools.partial(jax.jit, static_argnames=("kernel_size", "dilation", "causal_mask"))
def conv_res(x, weight, bias, *, kernel_size, dilation=1, causal_mask=True):
    """relu(x + masked_conv2d(x)) -- fused Pallas TPU kernel. NCHW in / NCHW out."""
    N, C, H, W = x.shape
    Cout, Cin, KH, KW = weight.shape
    assert KH == KW == kernel_size
    assert kernel_size % 2 == 1, "even kernel sizes need asymmetric 'same' padding"
    assert Cin == C and Cout == C, "residual x + conv(x) requires Cin == Cout"

    x = x.astype(jnp.float32)
    w = weight.astype(jnp.float32)
    if causal_mask:
        w = _causal_mask(w)
    b = bias.astype(jnp.float32)

    pad = dilation * (kernel_size - 1) // 2
    Hp = H + 2 * pad
    Wp = W + 2 * pad
    # Round the row stride up so the kernel's lane dim (H*Wp) is a multiple of
    # 128 -> unmasked full-lane stores (only when cheap to do so).
    lane_q = 128 // math.gcd(H, 128)
    if lane_q <= 16:
        Wp = ((Wp + lane_q - 1) // lane_q) * lane_q
    HWp = H * Wp
    Cp = ((C + 7) // 8) * 8                 # channels padded to a full sublane tile
    extra = dilation * (KW - 1)             # keeps the last tap's slice in bounds
    Lf = Hp * Wp + extra

    # ---- layout plumbing (tiny zero-pads / reshapes, no transposes) ----------
    # Padded input: channels -> Cp, spatial flattened with row stride Wp.
    xp = jnp.pad(x, ((0, 0), (0, Cp - C), (pad, pad), (pad, Wp - W - pad)))
    xpf = jnp.pad(xp.reshape(N, Cp, Hp * Wp), ((0, 0), (0, 0), (0, extra)))
    # Residual x on the same flattened (H, Wp) grid.
    resf = jnp.pad(x, ((0, 0), (0, 0), (0, 0), (0, Wp - W))).reshape(N, C, HWp)
    # Fused weight (Cout, KH*KW*Cp); row order (kh, kw, ci), padded channels zero.
    wmat = jnp.pad(jnp.transpose(w, (0, 2, 3, 1)),
                   ((0, 0), (0, 0), (0, 0), (0, Cp - C))).reshape(Cout, KH * KW * Cp)
    b2 = b.reshape(Cout, 1)

    kern = functools.partial(_conv_res_kernel, H=H, Wp=Wp, KH=KH, KW=KW,
                             Cp=Cp, dil=dilation)
    yp = pl.pallas_call(
        kern,
        grid=(N,),
        in_specs=[
            pl.BlockSpec((1, Cp, Lf), lambda n: (n, 0, 0)),
            pl.BlockSpec((1, C, HWp), lambda n: (n, 0, 0)),
            pl.BlockSpec((Cout, KH * KW * Cp), lambda n: (0, 0)),
            pl.BlockSpec((Cout, 1), lambda n: (0, 0)),
        ],
        out_specs=pl.BlockSpec((1, Cout, HWp), lambda n: (n, 0, 0)),
        out_shape=jax.ShapeDtypeStruct((N, Cout, HWp), jnp.float32),
        compiler_params=pltpu.CompilerParams(dimension_semantics=("parallel",)),
    )(xpf, resf, wmat, b2)

    # Drop the pad columns of each flattened row -> NCHW output.
    return yp.reshape(N, Cout, H, Wp)[:, :, :, :W]


if __name__ == "__main__":
    N, C, H, W = 2, 4, 16, 16
    kernel_size, dilation, groups, use_bias = 3, 1, 1, True   # groups=1 only (see TODO)

    key = jax.random.PRNGKey(0)
    kw_key, kb_key, kx_key = jax.random.split(key, 3)
    # nn.Conv2d default init: U(-b, b), b = 1/sqrt(fan_in), fan_in = (Cin/groups)*k*k.
    fan_in = (C // groups) * kernel_size * kernel_size
    bound = 1.0 / math.sqrt(fan_in)
    weight = jax.random.uniform(kw_key, (C, C, kernel_size, kernel_size),
                                jnp.float32, -bound, bound)
    bias = (jax.random.uniform(kb_key, (C,), jnp.float32, -bound, bound)
            if use_bias else jnp.zeros((C,), jnp.float32))
    x = jax.random.normal(kx_key, (N, C, H, W), dtype=jnp.float32)

    out = conv_res(x, weight, bias, kernel_size=kernel_size, dilation=dilation)
    jax.block_until_ready(out)
    assert out.shape == (N, C, H, W)

    # Pure-JAX reference (same masked weights) as a sanity check.
    pad = dilation * (kernel_size - 1) // 2
    wm = _causal_mask(weight)
    conv_ref = jax.lax.conv_general_dilated(
        x, wm, window_strides=(1, 1), padding=((pad, pad), (pad, pad)),
        rhs_dilation=(dilation, dilation),
        dimension_numbers=("NCHW", "OIHW", "NCHW"),
        precision=jax.lax.Precision.HIGHEST)
    ref = jnp.maximum(x + conv_ref + bias[None, :, None, None], 0.0)
    assert jnp.allclose(out, ref, rtol=1e-2, atol=1e-2), float(jnp.max(jnp.abs(out - ref)))
    print("KERNEL_OK")
</pallas_src>

<mosaic_0001>
module attributes {stable_mosaic.version = 11 : i64} {
  func.func @_conv_res_kernel(%arg0: i32, %arg1: memref<1x8x434xf32, #tpu.memory_space<vmem>>, %arg2: memref<1x4x384xf32, #tpu.memory_space<vmem>>, %arg3: memref<4x72xf32, #tpu.memory_space<vmem>>, %arg4: memref<4x1xf32, #tpu.memory_space<vmem>>, %arg5: memref<1x4x384xf32, #tpu.memory_space<vmem>>) attributes {dimension_semantics = [#tpu.dimension_semantics<parallel>], iteration_bounds = array<i64: 2>, scalar_prefetch = 0 : i64, scratch_operands = 0 : i64, tpu.core_type = #tpu.core_type<tc>, window_params = [{transform_indices = @transform_0, window_bounds = array<i64: 1, 8, 434>}, {transform_indices = @transform_1, window_bounds = array<i64: 1, 4, 384>}, {pipeline_mode = #tpu.pipeline_mode<synchronous>, transform_indices = @transform_2, window_bounds = array<i64: 4, 72>}, {pipeline_mode = #tpu.pipeline_mode<synchronous>, transform_indices = @transform_3, window_bounds = array<i64: 4, 1>}, {transform_indices = @transform_4, window_bounds = array<i64: 1, 4, 384>}]} {
    %c0 = arith.constant 0 : index
    %c0_0 = arith.constant 0 : index
    %c0_1 = arith.constant 0 : index
    %0 = vector.load %arg1[%c0, %c0_0, %c0_1] : memref<1x8x434xf32, #tpu.memory_space<vmem>>, vector<1x8x434xf32>
    %1 = vector.shape_cast %0 : vector<1x8x434xf32> to vector<8x434xf32>
    %2 = vector.extract_strided_slice %1 {offsets = [0, 0], sizes = [8, 384], strides = [1, 1]} : vector<8x434xf32> to vector<8x384xf32>
    %3 = vector.extract_strided_slice %1 {offsets = [0, 1], sizes = [8, 384], strides = [1, 1]} : vector<8x434xf32> to vector<8x384xf32>
    %4 = vector.extract_strided_slice %1 {offsets = [0, 2], sizes = [8, 384], strides = [1, 1]} : vector<8x434xf32> to vector<8x384xf32>
    %5 = vector.extract_strided_slice %1 {offsets = [0, 24], sizes = [8, 384], strides = [1, 1]} : vector<8x434xf32> to vector<8x384xf32>
    %6 = vector.extract_strided_slice %1 {offsets = [0, 25], sizes = [8, 384], strides = [1, 1]} : vector<8x434xf32> to vector<8x384xf32>
    %7 = vector.extract_strided_slice %1 {offsets = [0, 26], sizes = [8, 384], strides = [1, 1]} : vector<8x434xf32> to vector<8x384xf32>
    %8 = vector.extract_strided_slice %1 {offsets = [0, 48], sizes = [8, 384], strides = [1, 1]} : vector<8x434xf32> to vector<8x384xf32>
    %9 = vector.extract_strided_slice %1 {offsets = [0, 49], sizes = [8, 384], strides = [1, 1]} : vector<8x434xf32> to vector<8x384xf32>
    %10 = vector.extract_strided_slice %1 {offsets = [0, 50], sizes = [8, 384], strides = [1, 1]} : vector<8x434xf32> to vector<8x384xf32>
    %11 = tpu.concatenate %2, %3, %4, %5, %6, %7, %8, %9, %10 in 0 : vector<8x384xf32>, vector<8x384xf32>, vector<8x384xf32>, vector<8x384xf32>, vector<8x384xf32>, vector<8x384xf32>, vector<8x384xf32>, vector<8x384xf32>, vector<8x384xf32> -> vector<72x384xf32>
    %c0_2 = arith.constant 0 : index
    %c0_3 = arith.constant 0 : index
    %12 = vector.load %arg3[%c0_2, %c0_3] : memref<4x72xf32, #tpu.memory_space<vmem>>, vector<4x72xf32>
    %cst = arith.constant dense<0.000000e+00> : vector<4x384xf32>
    %13 = tpu.matmul %12, %11, %cst {dimension_numbers = #tpu.dot_dimension_numbers<[1], [0], [0], [1], [0, 0, 1, 1], [], []>} : vector<4x72xf32>, vector<72x384xf32>, vector<4x384xf32> -> vector<4x384xf32>
    %c0_4 = arith.constant 0 : index
    %c0_5 = arith.constant 0 : index
    %14 = vector.load %arg4[%c0_4, %c0_5] : memref<4x1xf32, #tpu.memory_space<vmem>>, vector<4x1xf32>
    %15 = vector.broadcast %14 : vector<4x1xf32> to vector<4x384xf32>
    %16 = arith.addf %13, %15 : vector<4x384xf32>
    %c0_6 = arith.constant 0 : index
    %c0_7 = arith.constant 0 : index
    %c0_8 = arith.constant 0 : index
    %17 = vector.load %arg2[%c0_6, %c0_7, %c0_8] : memref<1x4x384xf32, #tpu.memory_space<vmem>>, vector<1x4x384xf32>
    %18 = vector.shape_cast %17 : vector<1x4x384xf32> to vector<4x384xf32>
    %19 = arith.addf %16, %18 : vector<4x384xf32>
    %cst_9 = arith.constant 0.000000e+00 : f32
    %20 = vector.broadcast %cst_9 : f32 to vector<4x384xf32>
    %21 = arith.maximumf %19, %20 : vector<4x384xf32>
    %c0_10 = arith.constant 0 : index
    %c0_11 = arith.constant 0 : index
    %c0_12 = arith.constant 0 : index
    %22 = vector.load %arg5[%c0_10, %c0_11, %c0_12] : memref<1x4x384xf32, #tpu.memory_space<vmem>>, vector<1x4x384xf32>
    %23 = vector.shape_cast %22 : vector<1x4x384xf32> to vector<4x384xf32>
    %24 = vector.shape_cast %21 : vector<4x384xf32> to vector<1x4x384xf32>
    tpu.vector_store %arg5[%c0_10, %c0_11, %c0_12], %24 {strides = array<i32>} : memref<1x4x384xf32, #tpu.memory_space<vmem>>, vector<1x4x384xf32>,
    return
  }
  func.func @transform_0(%arg0: i32) -> (i32, i32, i32) {
    %c0_i32 = arith.constant 0 : i32
    %c0_i32_0 = arith.constant 0 : i32
    %c0_i32_1 = arith.constant 0 : i32
    return %arg0, %c0_i32, %c0_i32_0 : i32, i32, i32
  }
  func.func @transform_1(%arg0: i32) -> (i32, i32, i32) {
    %c0_i32 = arith.constant 0 : i32
    %c0_i32_0 = arith.constant 0 : i32
    %c0_i32_1 = arith.constant 0 : i32
    return %arg0, %c0_i32, %c0_i32_0 : i32, i32, i32
  }
  func.func @transform_2(%arg0: i32) -> (i32, i32) {
    %c0_i32 = arith.constant 0 : i32
    %c0_i32_0 = arith.constant 0 : i32
    %c0_i32_1 = arith.constant 0 : i32
    return %c0_i32, %c0_i32_0 : i32, i32
  }
  func.func @transform_3(%arg0: i32) -> (i32, i32) {
    %c0_i32 = arith.constant 0 : i32
    %c0_i32_0 = arith.constant 0 : i32
    %c0_i32_1 = arith.constant 0 : i32
    return %c0_i32, %c0_i32_0 : i32, i32
  }
  func.func @transform_4(%arg0: i32) -> (i32, i32, i32) {
    %c0_i32 = arith.constant 0 : i32
    %c0_i32_0 = arith.constant 0 : i32
    %c0_i32_1 = arith.constant 0 : i32
    return %arg0, %c0_i32, %c0_i32_0 : i32, i32, i32
  }
}

</mosaic_0001>

<llo_original>
// kernel: conv_res.1
$region0: #{conv_res.1}
  #allocation0 [shape = 'u32[]', space=smem, size = 0x4, offset = 0x4, fixed_abs, tag = 'smem constant byte address 0x4 - core index']
  #allocation1 [shape = 'u32[144,128]{1,0:T(1,128)}', space=vmem, size = 0x12000, scoped, tag = 'internal scratch']
  %s0 = inlined_call_operand.vmem [shape: f32[2,8,434], index: 0, kind: input, shape index: {}]
  %s1 = inlined_call_operand.vmem [shape: f32[2,4,384], index: 1, kind: input, shape index: {}]
  %s2 = inlined_call_operand.vmem [shape: f32[4,72], index: 2, kind: input, shape index: {}]
  %s3 = inlined_call_operand.vmem [shape: f32[4,1], index: 3, kind: input, shape index: {}]
  %s4 = inlined_call_operand.vmem [shape: f32[2,4,384], index: 4, kind: output, shape index: {}]
  %s5 = sld [smem:[#allocation0]]
  $region49: #{conv_res.1} parent=0
    _
  %s7 = ssub.s32 1, %s5
  %s8 = scalar_select 0, %s7, %s5
  loop: start=0, step=1, limit=4
  $region2: #{conv_res.1} parent=0 // loop_pre_header
    _
  $region3: #{conv_res.1} parent=0 // loop_header
    %s10 = sphi 0, %s14
    %p11 = scmp.ge.s32.totalorder %s10, 4
    %s20 = sphi 0, %s22
    %s23 = sphi 0, %s20
    %s24 = sphi 0, %s23
    %s40 = sphi 0, %s24
    %s46 = sphi 0, %s48
    %s49 = sphi 0, %s46
    %s50 = sphi 0, %s49
    %s66 = sphi 0, %s50
    %s70 = sphi 0, %s70
    %s72 = sphi 0, %s70
    %s73 = sphi 0, %s72
    %s87 = sphi 0, %s73
    %s91 = sphi 0, %s91
    %s93 = sphi 0, %s91
    %s94 = sphi 0, %s93
    %s108 = sphi 0, %s94
    %s114 = sphi 0, %s116
    %s117 = sphi 0, %s114
    %s118 = sphi 0, %s117
    %s134 = sphi 0, %s118
  $region4: #{conv_res.1} parent=0 // loop_header_branch
    %13 = sbr.rel (%p11) target = $region8
  $region5: #{conv_res.1} parent=0 // loop_body
    %s15 = ssub.s32 %s10, 1
    %s16 = ssub.s32 %s10, 2
    %s17 = sadd.s32 %s10, 1
    %s18 = ssub.s32 %s10, %s17
    %p19 = scmp.eq.s32.totalorder %s18, 0
    %s21 = sadd.s32 %s20, 1
    %s22 = scalar_select %p19, %s20, %s21
    %p25 = pneg %p19
    %p26 = scmp.eq.s32.totalorder %s10, 1
    %p27 = por %p25, %p26
    %p28 = scmp.ne.s32.totalorder %s20, %s23
    %p29 = scmp.eq.s32.totalorder %s10, 0
    %p30 = por %p28, %p29
    %p31 = scmp.ne.s32.totalorder %s20, %s23
    %p32 = scmp.eq.s32.totalorder %s15, 1
    %p33 = por %p31, %p32
    %p34 = scmp.ne.s32.totalorder %s23, %s24
    %p35 = scmp.eq.s32.totalorder %s15, 0
    %p36 = por %p34, %p35
    %p37 = scmp.ne.s32.totalorder %s23, %s24
    %p38 = scmp.eq.s32.totalorder %s16, 1
    %p39 = por %p37, %p38
    %p41 = scmp.ne.s32.totalorder %s24, %s40
    %p42 = scmp.eq.s32.totalorder %s16, 0
    %p43 = por %p41, %p42
    %s44 = ssub.s32 %s10, %s17
    %p45 = scmp.eq.s32.totalorder %s44, 0
    %s47 = sadd.s32 %s46, 1
    %s48 = scalar_select %p45, %s46, %s47
    %p51 = pneg %p45
    %p52 = scmp.eq.s32.totalorder %s10, 1
    %p53 = por %p51, %p52
    %p54 = scmp.ne.s32.totalorder %s46, %s49
    %p55 = scmp.eq.s32.totalorder %s10, 0
    %p56 = por %p54, %p55
    %p57 = scmp.ne.s32.totalorder %s46, %s49
    %p58 = scmp.eq.s32.totalorder %s15, 1
    %p59 = por %p57, %p58
    %p60 = scmp.ne.s32.totalorder %s49, %s50
    %p61 = scmp.eq.s32.totalorder %s15, 0
    %p62 = por %p60, %p61
    %p63 = scmp.ne.s32.totalorder %s49, %s50
    %p64 = scmp.eq.s32.totalorder %s16, 1
    %p65 = por %p63, %p64
    %p67 = scmp.ne.s32.totalorder %s50, %s66
    %p68 = scmp.eq.s32.totalorder %s16, 0
    %p69 = por %p67, %p68
    %s71 = sadd.s32 %s70, 1
    %p74 = scmp.eq.s32.totalorder %s10, 1
    %p75 = scmp.ne.s32.totalorder %s70, %s72
    %p76 = scmp.eq.s32.totalorder %s10, 0
    %p77 = por %p75, %p76
    %p78 = scmp.ne.s32.totalorder %s70, %s72
    %p79 = scmp.eq.s32.totalorder %s15, 1
    %p80 = por %p78, %p79
    %p81 = scmp.ne.s32.totalorder %s72, %s73
    %p82 = scmp.eq.s32.totalorder %s15, 0
    %p83 = por %p81, %p82
    %p84 = scmp.ne.s32.totalorder %s72, %s73
    %p85 = scmp.eq.s32.totalorder %s16, 1
    %p86 = por %p84, %p85
    %p88 = scmp.ne.s32.totalorder %s73, %s87
    %p89 = scmp.eq.s32.totalorder %s16, 0
    %p90 = por %p88, %p89
    %s92 = sadd.s32 %s91, 1
    %p95 = scmp.eq.s32.totalorder %s10, 1
    %p96 = scmp.ne.s32.totalorder %s91, %s93
    %p97 = scmp.eq.s32.totalorder %s10, 0
    %p98 = por %p96, %p97
    %p99 = scmp.ne.s32.totalorder %s91, %s93
    %p100 = scmp.eq.s32.totalorder %s15, 1
    %p101 = por %p99, %p100
    %p102 = scmp.ne.s32.totalorder %s93, %s94
    %p103 = scmp.eq.s32.totalorder %s15, 0
    %p104 = por %p102, %p103
    %p105 = scmp.ne.s32.totalorder %s93, %s94
    %p106 = scmp.eq.s32.totalorder %s16, 1
    %p107 = por %p105, %p106
    %p109 = scmp.ne.s32.totalorder %s94, %s108
    %p110 = scmp.eq.s32.totalorder %s16, 0
    %p111 = por %p109, %p110
    %s112 = ssub.s32 %s10, %s17
    %p113 = scmp.eq.s32.totalorder %s112, 0
    %s115 = sadd.s32 %s114, 1
    %s116 = scalar_select %p113, %s114, %s115
    %p119 = pneg %p113
    %p120 = scmp.eq.s32.totalorder %s10, 1
    %p121 = por %p119, %p120
    %p122 = scmp.ne.s32.totalorder %s114, %s117
    %p123 = scmp.eq.s32.totalorder %s10, 0
    %p124 = por %p122, %p123
    %p125 = scmp.ne.s32.totalorder %s114, %s117
    %p126 = scmp.eq.s32.totalorder %s15, 1
    %p127 = por %p125, %p126
    %p128 = scmp.ne.s32.totalorder %s117, %s118
    %p129 = scmp.eq.s32.totalorder %s15, 0
    %p130 = por %p128, %p129
    %p131 = scmp.ne.s32.totalorder %s117, %s118
    %p132 = scmp.eq.s32.totalorder %s16, 1
    %p133 = por %p131, %p132
    %p135 = scmp.ne.s32.totalorder %s118, %s134
    %p136 = scmp.eq.s32.totalorder %s16, 0
    %p137 = por %p135, %p136
    %p138 = scmp.le.s32.totalorder 1, %s10
    %p139 = scmp.lt.s32.totalorder %s10, 3
    %p140 = pnand %p138, %p139
    %p141 = pneg %p140
    // Predicated region
    $region9: #{conv_res.1} parent=5 // pred_check
      _
    $region10: #{conv_res.1} parent=5 // pred_check_branch
      %143 = sbr.rel (%p140) target = $region12
    $region11: #{conv_res.1} parent=5 // pred_region
      %s144 = ssub.s32 %s10, 1
      // Predicated region
      $region13: #{conv_res.1} parent=11 // pred_check
        %p145 = pneg %p83
      $region14: #{conv_res.1} parent=11 // pred_check_branch
        %147 = sbr.rel (%p145) target = $region16
      $region15: #{conv_res.1} parent=11 // pred_region
        _
      $region16: #{conv_res.1} parent=11 // pred_fallthru
        _
      // Predicated region
      $region17: #{conv_res.1} parent=11 // pred_check
        %p148 = pneg %p104
      $region18: #{conv_res.1} parent=11 // pred_check_branch
        %150 = sbr.rel (%p148) target = $region20
      $region19: #{conv_res.1} parent=11 // pred_region
        _
      $region20: #{conv_res.1} parent=11 // pred_fallthru
        _
    $region12: #{conv_res.1} parent=5 // pred_fallthru
      _
    %p151 = scmp.lt.s32.totalorder %s10, 2
    // Predicated region
    $region21: #{conv_res.1} parent=5 // pred_check
      %p152 = pneg %p151
    $region22: #{conv_res.1} parent=5 // pred_check_branch
      %154 = sbr.rel (%p152) target = $region24
    $region23: #{conv_res.1} parent=5 // pred_region
      // Predicated region
      $region25: #{conv_res.1} parent=23 // pred_check
        %p155 = pneg %p30
      $region26: #{conv_res.1} parent=23 // pred_check_branch
        %157 = sbr.rel (%p155) target = $region28
      $region27: #{conv_res.1} parent=23 // pred_region
        %p158 = scmp.lt.s32.totalorder %s10, 1
        %s159 = scalar_select %p158, %s10, 1
        %s160 = smul.addr %s159, 4
        %s161 = smul.addr %s160, 8
        %s162 = scalar_lea.vmem %s0, %s161
      $region28: #{conv_res.1} parent=23 // pred_fallthru
        _
      // Predicated region
      $region29: #{conv_res.1} parent=23 // pred_check
        %p163 = pneg %p56
      $region30: #{conv_res.1} parent=23 // pred_check_branch
        %165 = sbr.rel (%p163) target = $region32
      $region31: #{conv_res.1} parent=23 // pred_region
        %p166 = scmp.lt.s32.totalorder %s10, 1
        %s167 = scalar_select %p166, %s10, 1
        %s168 = smul.addr %s167, 3
        %s169 = smul.addr %s168, 4
        %s170 = scalar_lea.vmem %s1, %s169
      $region32: #{conv_res.1} parent=23 // pred_fallthru
        _
    $region24: #{conv_res.1} parent=5 // pred_fallthru
      _
    %p171 = scmp.le.s32.totalorder 1, %s10
    %p172 = scmp.lt.s32.totalorder %s10, 3
    %p173 = pnand %p171, %p172
    %p174 = pneg %p173
    // Predicated region
    $region33: #{conv_res.1} parent=5 // pred_check
      _
    $region34: #{conv_res.1} parent=5 // pred_check_branch
      %176 = sbr.rel (%p173) target = $region36
    $region35: #{conv_res.1} parent=5 // pred_region
      %s177 = ssub.s32 %s10, 1
      %p178 = scmp.lt.s32.totalorder %s15, 1
      %s179 = scalar_select %p178, %s15, 1
      %s180 = smul.addr %s179, 4
      %s181 = smul.addr %s180, 8
      %s182 = scalar_lea.vmem %s0, %s181
      %p183 = pneg %p36
      %p184 = pneg %p33
      %p185 = scmp.lt.s32.totalorder %s15, 1
      %s186 = scalar_select %p185, %s15, 1
      %s187 = smul.addr %s186, 3
      %s188 = smul.addr %s187, 4
      %s189 = scalar_lea.vmem %s1, %s188
      %p190 = pneg %p62
      %p191 = pneg %p59
      %p192 = pneg %p83
      %p193 = pneg %p80
      %p194 = pneg %p104
      %p195 = pneg %p101
      %p196 = pneg %p130
      %p197 = pneg %p127
      %p198 = scmp.lt.s32.totalorder %s15, 1
      %s199 = scalar_select %p198, %s15, 1
      %s200 = smul.addr %s199, 3
      %s201 = smul.addr %s200, 4
      %s202 = scalar_lea.vmem %s4, %s201
      %p203 = scmp.lt.s32.totalorder %s15, 1
      %s204 = scalar_select %p203, %s15, 1
      %s205 = smul.addr %s204, 4
      %s206 = smul.addr %s205, 8
      %s207 = scalar_lea.vmem %s0, %s206
      %p208 = scmp.lt.s32.totalorder %s15, 1
      %s209 = scalar_select %p208, %s15, 1
      %s210 = smul.addr %s209, 3
      %s211 = smul.addr %s210, 4
      %s212 = scalar_lea.vmem %s1, %s211
      %p213 = scmp.lt.s32.totalorder %s15, 1
      %s214 = scalar_select %p213, %s15, 1
      %s215 = smul.addr %s214, 3
      %s216 = smul.addr %s215, 4
      %s217 = scalar_lea.vmem %s4, %s216
      %v218 = vld [vmem:[%s207] sm:$0xff]
      %v219 = vld [vmem:[%s207 + $0x8] sm:$0xff]
      %v220 = vld [vmem:[%s207 + $0x10] sm:$0xff]
      %v221 = vld [vmem:[%s207 + $0x18] sm:$0xff]
      %226 = vrot.lane.b32.xlu0 %v218, 127
      %v227 = vpop.permute.xlu0 %226
      %228 = vrot.lane.b32.xlu0 %v219, 127
      %v229 = vpop.permute.xlu0 %228
      %230 = vrot.lane.b32.xlu0 %v220, 127
      %v231 = vpop.permute.xlu0 %230
      %232 = vrot.lane.b32.xlu0 %v221, 127
      %v233 = vpop.permute.xlu0 %232
      %vm234 = vcmask 1039360
      %v235 = vsel %vm234, %v227, %v229
      %v236 = vsel %vm234, %v229, %v231
      %v237 = vsel %vm234, %v231, %v233
      %241 = vrot.lane.b32.xlu0 %v218, 126
      %v242 = vpop.permute.xlu0 %241
      %243 = vrot.lane.b32.xlu0 %v219, 126
      %v244 = vpop.permute.xlu0 %243
      %245 = vrot.lane.b32.xlu0 %v220, 126
      %v246 = vpop.permute.xlu0 %245
      %247 = vrot.lane.b32.xlu0 %v221, 126
      %v248 = vpop.permute.xlu0 %247
      %vm249 = vcmask 1031168
      %v250 = vsel %vm249, %v242, %v244
      %v251 = vsel %vm249, %v244, %v246
      %v252 = vsel %vm249, %v246, %v248
      %256 = vrot.lane.b32.xlu0 %v218, 104
      %v257 = vpop.permute.xlu0 %256
      %258 = vrot.lane.b32.xlu0 %v219, 104
      %v259 = vpop.permute.xlu0 %258
      %260 = vrot.lane.b32.xlu0 %v220, 104
      %v261 = vpop.permute.xlu0 %260
      %262 = vrot.lane.b32.xlu0 %v221, 104
      %v263 = vpop.permute.xlu0 %262
      %vm264 = vcmask 850944
      %v265 = vsel %vm264, %v257, %v259
      %v266 = vsel %vm264, %v259, %v261
      %v267 = vsel %vm264, %v261, %v263
      %271 = vrot.lane.b32.xlu0 %v218, 103
      %v272 = vpop.permute.xlu0 %271
      %273 = vrot.lane.b32.xlu0 %v219, 103
      %v274 = vpop.permute.xlu0 %273
      %275 = vrot.lane.b32.xlu0 %v220, 103
      %v276 = vpop.permute.xlu0 %275
      %277 = vrot.lane.b32.xlu0 %v221, 103
      %v278 = vpop.permute.xlu0 %277
      %vm279 = vcmask 842752
      %v280 = vsel %vm279, %v272, %v274
      %v281 = vsel %vm279, %v274, %v276
      %v282 = vsel %vm279, %v276, %v278
      %286 = vrot.lane.b32.xlu0 %v218, 102
      %v287 = vpop.permute.xlu0 %286
      %288 = vrot.lane.b32.xlu0 %v219, 102
      %v289 = vpop.permute.xlu0 %288
      %290 = vrot.lane.b32.xlu0 %v220, 102
      %v291 = vpop.permute.xlu0 %290
      %292 = vrot.lane.b32.xlu0 %v221, 102
      %v293 = vpop.permute.xlu0 %292
      %vm294 = vcmask 834560
      %v295 = vsel %vm294, %v287, %v289
      %v296 = vsel %vm294, %v289, %v291
      %v297 = vsel %vm294, %v291, %v293
      %301 = vrot.lane.b32.xlu0 %v218, 80
      %v302 = vpop.permute.xlu0 %301
      %303 = vrot.lane.b32.xlu0 %v219, 80
      %v304 = vpop.permute.xlu0 %303
      %305 = vrot.lane.b32.xlu0 %v220, 80
      %v306 = vpop.permute.xlu0 %305
      %307 = vrot.lane.b32.xlu0 %v221, 80
      %v308 = vpop.permute.xlu0 %307
      %vm309 = vcmask 654336
      %v310 = vsel %vm309, %v302, %v304
      %v311 = vsel %vm309, %v304, %v306
      %v312 = vsel %vm309, %v306, %v308
      %316 = vrot.lane.b32.xlu0 %v218, 79
      %v317 = vpop.permute.xlu0 %316
      %318 = vrot.lane.b32.xlu0 %v219, 79
      %v319 = vpop.permute.xlu0 %318
      %320 = vrot.lane.b32.xlu0 %v220, 79
      %v321 = vpop.permute.xlu0 %320
      %322 = vrot.lane.b32.xlu0 %v221, 79
      %v323 = vpop.permute.xlu0 %322
      %vm324 = vcmask 646144
      %v325 = vsel %vm324, %v317, %v319
      %v326 = vsel %vm324, %v319, %v321
      %v327 = vsel %vm324, %v321, %v323
      %331 = vrot.lane.b32.xlu0 %v218, 78
      %v332 = vpop.permute.xlu0 %331
      %333 = vrot.lane.b32.xlu0 %v219, 78
      %v334 = vpop.permute.xlu0 %333
      %335 = vrot.lane.b32.xlu0 %v220, 78
      %v336 = vpop.permute.xlu0 %335
      %337 = vrot.lane.b32.xlu0 %v221, 78
      %v338 = vpop.permute.xlu0 %337
      %vm339 = vcmask 637952
      %v340 = vsel %vm339, %v332, %v334
      %v341 = vsel %vm339, %v334, %v336
      %v342 = vsel %vm339, %v336, %v338
      %v346 = vld [vmem:[%s2] sm:$0xf]
      %v347 = vld [vmem:[%s3] sm:$0xf]
      %349 = vset.pattern.permute.xlu0 0
      %350 = vperm.xlu0 %349, %v347
      %v351 = vpop.permute.xlu0 %350
      %vm353 = vcmask 588800
      %v355 = vsel %vm353, %v346, 0
      %357 = vmatprep.subr.mxu0 0.0
      %358 = vmatpush1.msra.mxu0 0.0
      %359 = vmatprep.subr.mxu0 0.0
      %360 = vmatpush1.msra.mxu0 0.0
      %361 = vmatprep.subr.mxu0 0.0
      %362 = vmatpush1.msra.mxu0 0.0
      %363 = vmatprep.subr.mxu0 0.0
      %364 = vmatpush1.msra.mxu0 0.0
      %365 = vmatprep.subr.mxu0 0.0
      %366 = vmatpush1.msra.mxu0 0.0
      %367 = vmatprep.subr.mxu0 0.0
      %368 = vmatpush1.msra.mxu0 0.0
      %369 = vmatprep.subr.mxu0 0.0
      %370 = vmatpush1.msra.mxu0 0.0
      %371 = vmatprep.subr.mxu0 %v341
      %372 = vmatpush1.msra.mxu0 %v340
      %373 = vmatprep.subr.mxu0 %v326
      %374 = vmatpush1.msra.mxu0 %v325
      %375 = vmatprep.subr.mxu0 %v311
      %376 = vmatpush1.msra.mxu0 %v310
      %377 = vmatprep.subr.mxu0 %v296
      %378 = vmatpush1.msra.mxu0 %v295
      %379 = vmatprep.subr.mxu0 %v281
      %380 = vmatpush1.msra.mxu0 %v280
      %381 = vmatprep.subr.mxu0 %v266
      %382 = vmatpush1.msra.mxu0 %v265
      %383 = vmatprep.subr.mxu0 %v251
      %384 = vmatpush1.msra.mxu0 %v250
      %385 = vmatprep.subr.mxu0 %v236
      %386 = vmatpush1.msra.mxu0 %v235
      %387 = vmatprep.subr.mxu0 %v219
      %388 = vmatpush1.msra.mxu0 %v218
      %389 = vmatprep.subr.mxu0 0.0
      %390 = vmatpush2.msra.mxu0 0.0
      %391 = vmatprep.subr.mxu0 0.0
      %392 = vmatpush2.msra.mxu0 0.0
      %393 = vmatprep.subr.mxu0 0.0
      %394 = vmatpush2.msra.mxu0 0.0
      %395 = vmatprep.subr.mxu0 0.0
      %396 = vmatpush2.msra.mxu0 0.0
      %397 = vmatprep.subr.mxu0 0.0
      %398 = vmatpush2.msra.mxu0 0.0
      %399 = vmatprep.subr.mxu0 0.0
      %400 = vmatpush2.msra.mxu0 0.0
      %401 = vmatprep.subr.mxu0 0.0
      %402 = vmatpush2.msra.mxu0 0.0
      %403 = vmatprep.subr.mxu0 0.0
      %404 = vmatpush2.msra.mxu0 0.0
      %405 = vmatprep.subr.mxu0 0.0
      %406 = vmatpush2.msra.mxu0 0.0
      %407 = vmatprep.subr.mxu0 0.0
      %408 = vmatpush2.msra.mxu0 0.0
      %409 = vmatprep.subr.mxu0 0.0
      %410 = vmatpush2.msra.mxu0 0.0
      %411 = vmatprep.subr.mxu0 0.0
      %412 = vmatpush2.msra.mxu0 0.0
      %413 = vmatprep.subr.mxu0 0.0
      %414 = vmatpush2.msra.mxu0 0.0
      %415 = vmatprep.subr.mxu0 0.0
      %416 = vmatpush2.msra.mxu0 0.0
      %417 = vmatprep.subr.mxu0 0.0
      %418 = vmatpush2.msra.mxu0 0.0
      %419 = vmatprep.subr.mxu0 0.0
      %420 = vmatpush2.msra.mxu0 0.0
      %421 = vmatprep.mubr.f32.mxu0 0.0
      %422 = vmatmul.mubr.f32.gmra.mxu0 %v355
      %v423 = vpop.f32.mrf.mxu0
      %v424 = vadd.f32 %v351, %v423
      %v425 = vpop.f32.mrf.mxu0
      %v426 = vadd.f32 %v351, %v425
      %427 = vdwg.mxu0
      %428 = vmatprep.subr.mxu0 0.0
      %429 = vmatpush1.msra.mxu0 0.0
      %430 = vmatprep.subr.mxu0 0.0
      %431 = vmatpush1.msra.mxu0 0.0
      %432 = vmatprep.subr.mxu0 0.0
      %433 = vmatpush1.msra.mxu0 0.0
      %434 = vmatprep.subr.mxu0 0.0
      %435 = vmatpush1.msra.mxu0 0.0
      %436 = vmatprep.subr.mxu0 0.0
      %437 = vmatpush1.msra.mxu0 0.0
      %438 = vmatprep.subr.mxu0 0.0
      %439 = vmatpush1.msra.mxu0 0.0
      %440 = vmatprep.subr.mxu0 0.0
      %441 = vmatpush1.msra.mxu0 0.0
      %442 = vmatprep.subr.mxu0 0.0
      %443 = vmatpush1.msra.mxu0 %v342
      %444 = vmatprep.subr.mxu0 0.0
      %445 = vmatpush1.msra.mxu0 %v327
      %446 = vmatprep.subr.mxu0 0.0
      %447 = vmatpush1.msra.mxu0 %v312
      %448 = vmatprep.subr.mxu0 0.0
      %449 = vmatpush1.msra.mxu0 %v297
      %450 = vmatprep.subr.mxu0 0.0
      %451 = vmatpush1.msra.mxu0 %v282
      %452 = vmatprep.subr.mxu0 0.0
      %453 = vmatpush1.msra.mxu0 %v267
      %454 = vmatprep.subr.mxu0 0.0
      %455 = vmatpush1.msra.mxu0 %v252
      %456 = vmatprep.subr.mxu0 0.0
      %457 = vmatpush1.msra.mxu0 %v237
      %458 = vmatprep.subr.mxu0 0.0
      %459 = vmatpush1.msra.mxu0 %v220
      %460 = vmatprep.subr.mxu0 0.0
      %461 = vmatpush2.msra.mxu0 0.0
      %462 = vmatprep.subr.mxu0 0.0
      %463 = vmatpush2.msra.mxu0 0.0
      %464 = vmatprep.subr.mxu0 0.0
      %465 = vmatpush2.msra.mxu0 0.0
      %466 = vmatprep.subr.mxu0 0.0
      %467 = vmatpush2.msra.mxu0 0.0
      %468 = vmatprep.subr.mxu0 0.0
      %469 = vmatpush2.msra.mxu0 0.0
      %470 = vmatprep.subr.mxu0 0.0
      %471 = vmatpush2.msra.mxu0 0.0
      %472 = vmatprep.subr.mxu0 0.0
      %473 = vmatpush2.msra.mxu0 0.0
      %474 = vmatprep.subr.mxu0 0.0
      %475 = vmatpush2.msra.mxu0 0.0
      %476 = vmatprep.subr.mxu0 0.0
      %477 = vmatpush2.msra.mxu0 0.0
      %478 = vmatprep.subr.mxu0 0.0
      %479 = vmatpush2.msra.mxu0 0.0
      %480 = vmatprep.subr.mxu0 0.0
      %481 = vmatpush2.msra.mxu0 0.0
      %482 = vmatprep.subr.mxu0 0.0
      %483 = vmatpush2.msra.mxu0 0.0
      %484 = vmatprep.subr.mxu0 0.0
      %485 = vmatpush2.msra.mxu0 0.0
      %486 = vmatprep.subr.mxu0 0.0
      %487 = vmatpush2.msra.mxu0 0.0
      %488 = vmatprep.subr.mxu0 0.0
      %489 = vmatpush2.msra.mxu0 0.0
      %490 = vmatprep.subr.mxu0 0.0
      %491 = vmatpush2.msra.mxu0 0.0
      %492 = vmatprep.mubr.f32.mxu0 0.0
      %493 = vmatmul.mubr.f32.gmra.mxu0 %v355
      %v494 = vpop.f32.mrf.mxu0
      %v495 = vadd.f32 %v351, %v494
      %v496 = vpop.f32.mrf.mxu0
      %497 = vdwg.mxu0
      %v498 = vld [vmem:[%s212] sm:$0xff]
      %v499 = vld [vmem:[%s212 + $0x8] sm:$0xf]
      %v501 = vcombine.high %v498, %v498
      %v503 = vadd.f32 %v424, %v498
      %v504 = vadd.f32 %v426, %v501
      %v505 = vadd.f32 %v495, %v499
      %v506 = vmax.f32 %v503, 0.0
      %v507 = vmax.f32 %v504, 0.0
      %v508 = vmax.f32 %v505, 0.0
      %v511 = vcombine.low %v506, %v507
      %513 = vst [vmem:[%s217] sm:$0xff] %v511
      %514 = vst [vmem:[%s217 + $0x8] sm:$0xf] %v508
      %p515 = scmp.lt.s32.totalorder %s15, 1
      %s516 = scalar_select %p515, %s15, 1
      %s517 = smul.addr %s516, 3
      %s518 = smul.addr %s517, 4
      %s519 = scalar_lea.vmem %s4, %s518
      // Predicated region
      $region37: #{conv_res.1} parent=35 // pred_check
        %p520 = pneg %p127
      $region38: #{conv_res.1} parent=35 // pred_check_branch
        %522 = sbr.rel (%p520) target = $region40
      $region39: #{conv_res.1} parent=35 // pred_region
        _
      $region40: #{conv_res.1} parent=35 // pred_fallthru
        _
    $region36: #{conv_res.1} parent=5 // pred_fallthru
      _
    %p523 = scmp.le.s32.totalorder 2, %s10
    // Predicated region
    $region41: #{conv_res.1} parent=5 // pred_check
      %p524 = pneg %p523
    $region42: #{conv_res.1} parent=5 // pred_check_branch
      %526 = sbr.rel (%p524) target = $region44
    $region43: #{conv_res.1} parent=5 // pred_region
      %s527 = ssub.s32 %s10, 2
      // Predicated region
      $region45: #{conv_res.1} parent=43 // pred_check
        %p528 = pneg %p133
      $region46: #{conv_res.1} parent=43 // pred_check_branch
        %530 = sbr.rel (%p528) target = $region48
      $region47: #{conv_res.1} parent=43 // pred_region
        %p531 = scmp.lt.s32.totalorder %s16, 1
        %s532 = scalar_select %p531, %s16, 1
        %s533 = smul.addr %s532, 3
        %s534 = smul.addr %s533, 4
        %s535 = scalar_lea.vmem %s4, %s534
      $region48: #{conv_res.1} parent=43 // pred_fallthru
        _
    $region44: #{conv_res.1} parent=5 // pred_fallthru
      _
  $region6: #{conv_res.1} parent=0 // loop_footer
    %s14 = sadd.s32 1, %s10
  $region7: #{conv_res.1} parent=0 // loop_footer_branch
    %9 = sbr.rel target = $region3
  $region8: #{conv_res.1} parent=0 // loop_exit
    _

</llo_original>
